<compile_context>
chip_gen: v6e
topology: v6e:2x2x1
jax: 0.10.0
libtpu: 0.0.40
codegen_flags: <defaults>
</compile_context>

<pallas_src>
import math

import jax
import jax.numpy as jnp
from jax.experimental import pallas as pl
from jax.experimental.pallas import tpu as pltpu


def _cross_attention_kernel(x_ref, z_ref, o_ref):
    # x_ref: (Bt, C, Nx) search feature  -> queries along the lane axis
    # z_ref: (Bt, C, Nz) template feature -> keys == values
    C = x_ref.shape[1]
    scale = 1.0 / math.sqrt(C)

    # Fold the softmax scale into K (smaller than Q); V = K means the scale on
    # V cancels exactly through the 1/(l*scale) normalization below.
    # MXU operands in bf16, f32 accumulate; softmax / normalize stay f32
    # (v5e VPU/EUP have no bf16 datapath).
    k = (z_ref[...] * scale).astype(jnp.bfloat16)            # (Bt, C, Nz)
    q = x_ref[...].astype(jnp.bfloat16)                       # (Bt, C, Nx)

    # Batched S^T = K^T Q : contract over C (sublane axis of both operands).
    # No explicit transpose of k is materialized.
    s = jnp.einsum("bcz,bcx->bzx", k, q,
                   preferred_element_type=jnp.float32)        # (Bt, Nz, Nx) f32

    # Numerically-stable softmax over the template (Nz / sublane) axis, f32.
    m = jnp.max(s, axis=1, keepdims=True)                     # (Bt, 1, Nx)
    p = jnp.exp(s - m)                                        # (Bt, Nz, Nx)
    l = jnp.sum(p, axis=1, keepdims=True)                     # (Bt, 1, Nx)

    # O^T = (scale*K) P (unnormalized): contract over Nz -> (Bt, C, Nx),
    # lane-dense output.
    out = jnp.einsum("bcz,bzx->bcx", k, p.astype(jnp.bfloat16),
                     preferred_element_type=jnp.float32)       # (Bt, C, Nx) f32

    # Normalize after the matmul; undo the folded K-scale exactly.
    # Reciprocal goes to the (idle) EUP slot.
    o_ref[...] = (out * pl.reciprocal(l * scale, approx=True)).astype(o_ref.dtype)


def _num_tensorcores():
    """Best-effort detection of TensorCores per chip (v7x has 2)."""
    try:
        kind = jax.devices()[0].device_kind.lower()
    except Exception:
        return 1
    return 2 if ("v7" in kind or "7x" in kind) else 1


def _pick_batch_tile(B, C, Nx, Nz, itemsize=4):
    """Largest batch tile that (a) fits a conservative VMEM budget with
    double-buffering, (b) keeps >= num_tensorcores parallel grid steps,
    and (c) divides B exactly."""
    # Double-buffered x, z, out tiles per grid step.
    per_batch = 2 * (2 * C * Nx + C * Nz) * itemsize
    budget = 8 * 1024 * 1024  # well under 16 MiB (v5e) / 32 MiB (v6e/v7x) scoped VMEM
    bt = max(1, min(B, budget // max(per_batch, 1)))
    # Keep >= 2 "parallel" grid steps on 2-TC parts (v7x megacore sharding).
    min_steps = min(B, _num_tensorcores())
    bt = min(bt, max(1, B // min_steps))
    while B % bt != 0:
        bt -= 1
    return bt


def cross_attention_nchw(x_seq, z_seq, *, batch_tile=None):
    """x_seq: (B, C, Nx) queries, z_seq: (B, C, Nz) keys/values -> (B, C, Nx)."""
    B, C, Nx = x_seq.shape
    _, _, Nz = z_seq.shape
    Bt = _pick_batch_tile(B, C, Nx, Nz) if batch_tile is None else batch_tile
    assert B % Bt == 0, (B, Bt)
    return pl.pallas_call(
        _cross_attention_kernel,
        out_shape=jax.ShapeDtypeStruct((B, C, Nx), x_seq.dtype),
        grid_spec=pltpu.PrefetchScalarGridSpec(
            num_scalar_prefetch=0,
            grid=(B // Bt,),
            in_specs=[
                pl.BlockSpec((Bt, C, Nx), lambda b: (b, 0, 0)),
                pl.BlockSpec((Bt, C, Nz), lambda b: (b, 0, 0)),
            ],
            out_specs=pl.BlockSpec((Bt, C, Nx), lambda b: (b, 0, 0)),
        ),
        compiler_params=pltpu.CompilerParams(
            dimension_semantics=("parallel",)),
    )(x_seq, z_seq)


@jax.jit
def attention_forward(z_f, x_f):
    """z_f: (B, C, Hz, Wz) template feature, x_f: (B, C, Hx, Wx) search feature.

    Returns attended search feature with the same NCHW shape as x_f.
    """
    B, C, Hz, Wz = z_f.shape
    _, _, Hx, Wx = x_f.shape

    # Pure reshapes (no transposes): the kernel consumes NCHW directly.
    x_seq = x_f.reshape(B, C, Hx * Wx)
    z_seq = z_f.reshape(B, C, Hz * Wz)

    o = cross_attention_nchw(x_seq, z_seq)                    # (B, C, Nx)
    return o.reshape(B, C, Hx, Wx)


def _reference(z_f, x_f):
    """Pure-JAX f32 reference for validation (same V=K semantics)."""
    B, C, Hz, Wz = z_f.shape
    _, _, Hx, Wx = x_f.shape
    q = jnp.transpose(x_f.reshape(B, C, Hx * Wx), (0, 2, 1))
    k = jnp.transpose(z_f.reshape(B, C, Hz * Wz), (0, 2, 1))
    s = jnp.einsum("bqc,bkc->bqk", q, k) / math.sqrt(C)
    p = jax.nn.softmax(s, axis=-1)
    o = jnp.einsum("bqk,bkc->bqc", p, k)
    return jnp.transpose(o, (0, 2, 1)).reshape(B, C, Hx, Wx)


if __name__ == "__main__":
    key = jax.random.PRNGKey(0)
    kz, kx = jax.random.split(key)

    B, C = 2, 32
    Hz = Wz = 8      # template feature spatial size  -> Nz = 64
    Hx = Wx = 16     # search feature spatial size    -> Nx = 256

    z_f = jax.random.normal(kz, (B, C, Hz, Wz), dtype=jnp.float32)
    x_f = jax.random.normal(kx, (B, C, Hx, Wx), dtype=jnp.float32)

    out = attention_forward(z_f, x_f)
    jax.block_until_ready(out)

    ref = _reference(z_f, x_f)
    assert out.shape == (B, C, Hx, Wx)
    # Tolerance accounts for the intentional bf16 MXU operands (f32 accumulate,
    # f32 softmax) and the approx EUP reciprocal.
    assert jnp.allclose(out, ref, atol=2e-2, rtol=2e-2), float(
        jnp.max(jnp.abs(out - ref)))

    print("KERNEL_OK")
</pallas_src>

<mosaic_0001>
module attributes {stable_mosaic.version = 11 : i64} {
  func.func @_cross_attention_kernel(%arg0: i32, %arg1: memref<2x32x256xf32, #tpu.memory_space<vmem>>, %arg2: memref<2x32x64xf32, #tpu.memory_space<vmem>>, %arg3: memref<2x32x256xf32, #tpu.memory_space<vmem>>) attributes {dimension_semantics = [#tpu.dimension_semantics<parallel>], iteration_bounds = array<i64: 1>, scalar_prefetch = 0 : i64, scratch_operands = 0 : i64, tpu.core_type = #tpu.core_type<tc>, window_params = [{transform_indices = @transform_0, window_bounds = array<i64: 2, 32, 256>}, {transform_indices = @transform_1, window_bounds = array<i64: 2, 32, 64>}, {transform_indices = @transform_2, window_bounds = array<i64: 2, 32, 256>}]} {
    %c0 = arith.constant 0 : index
    %c0_0 = arith.constant 0 : index
    %c0_1 = arith.constant 0 : index
    %0 = vector.load %arg2[%c0, %c0_0, %c0_1] : memref<2x32x64xf32, #tpu.memory_space<vmem>>, vector<2x32x64xf32>
    %cst = arith.constant 0.176776692 : f32
    %1 = vector.broadcast %cst : f32 to vector<2x32x64xf32>
    %2 = arith.mulf %0, %1 : vector<2x32x64xf32>
    %3 = arith.truncf %2 : vector<2x32x64xf32> to vector<2x32x64xbf16>
    %c0_2 = arith.constant 0 : index
    %c0_3 = arith.constant 0 : index
    %c0_4 = arith.constant 0 : index
    %4 = vector.load %arg1[%c0_2, %c0_3, %c0_4] : memref<2x32x256xf32, #tpu.memory_space<vmem>>, vector<2x32x256xf32>
    %5 = arith.truncf %4 : vector<2x32x256xf32> to vector<2x32x256xbf16>
    "tpu.trace_start"() <{level = 10 : i32, message = "bcz,bcx->bzx"}> : () -> ()
    %cst_5 = arith.constant dense<0.000000e+00> : vector<2x64x256xf32>
    %6 = tpu.matmul %3, %5, %cst_5 {dimension_numbers = #tpu.dot_dimension_numbers<[1], [1], [2], [2], [0, 0, 0, 2, 1, 2], [0], [0]>} : vector<2x32x64xbf16>, vector<2x32x256xbf16>, vector<2x64x256xf32> -> vector<2x64x256xf32>
    "tpu.trace_stop"() : () -> ()
    %cst_6 = arith.constant dense<0xFF800000> : vector<2x256xf32>
    %7 = vector.multi_reduction <maximumf>, %6, %cst_6 [1] : vector<2x64x256xf32> to vector<2x256xf32>
    %8 = vector.shape_cast %7 : vector<2x256xf32> to vector<2x1x256xf32>
    %9 = vector.broadcast %8 : vector<2x1x256xf32> to vector<2x64x256xf32>
    %10 = arith.subf %6, %9 : vector<2x64x256xf32>
    %11 = math.exp %10 : vector<2x64x256xf32>
    %cst_7 = arith.constant dense<0.000000e+00> : vector<2x256xf32>
    %12 = vector.multi_reduction <add>, %11, %cst_7 [1] : vector<2x64x256xf32> to vector<2x256xf32>
    %13 = vector.shape_cast %12 : vector<2x256xf32> to vector<2x1x256xf32>
    %14 = arith.truncf %11 : vector<2x64x256xf32> to vector<2x64x256xbf16>
    "tpu.trace_start"() <{level = 10 : i32, message = "bcz,bzx->bcx"}> : () -> ()
    %cst_8 = arith.constant dense<0.000000e+00> : vector<2x32x256xf32>
    %15 = tpu.matmul %3, %14, %cst_8 {dimension_numbers = #tpu.dot_dimension_numbers<[2], [1], [1], [2], [0, 0, 0, 1, 1, 2], [0], [0]>} : vector<2x32x64xbf16>, vector<2x64x256xbf16>, vector<2x32x256xf32> -> vector<2x32x256xf32>
    "tpu.trace_stop"() : () -> ()
    %cst_9 = arith.constant 0.176776692 : f32
    %16 = vector.broadcast %cst_9 : f32 to vector<2x1x256xf32>
    %17 = arith.mulf %13, %16 : vector<2x1x256xf32>
    %18 = tpu.reciprocal %17 {approx = true} : vector<2x1x256xf32> -> vector<2x1x256xf32>
    %19 = vector.broadcast %18 : vector<2x1x256xf32> to vector<2x32x256xf32>
    %20 = arith.mulf %15, %19 : vector<2x32x256xf32>
    %c0_10 = arith.constant 0 : index
    %c0_11 = arith.constant 0 : index
    %c0_12 = arith.constant 0 : index
    %21 = vector.load %arg3[%c0_10, %c0_11, %c0_12] : memref<2x32x256xf32, #tpu.memory_space<vmem>>, vector<2x32x256xf32>
    tpu.vector_store %arg3[%c0_10, %c0_11, %c0_12], %20 {strides = array<i32>} : memref<2x32x256xf32, #tpu.memory_space<vmem>>, vector<2x32x256xf32>,
    return
  }
  func.func @transform_0(%arg0: i32) -> (i32, i32, i32) {
    %c0_i32 = arith.constant 0 : i32
    %c0_i32_0 = arith.constant 0 : i32
    %c0_i32_1 = arith.constant 0 : i32
    return %arg0, %c0_i32, %c0_i32_0 : i32, i32, i32
  }
  func.func @transform_1(%arg0: i32) -> (i32, i32, i32) {
    %c0_i32 = arith.constant 0 : i32
    %c0_i32_0 = arith.constant 0 : i32
    %c0_i32_1 = arith.constant 0 : i32
    return %arg0, %c0_i32, %c0_i32_0 : i32, i32, i32
  }
  func.func @transform_2(%arg0: i32) -> (i32, i32, i32) {
    %c0_i32 = arith.constant 0 : i32
    %c0_i32_0 = arith.constant 0 : i32
    %c0_i32_1 = arith.constant 0 : i32
    return %arg0, %c0_i32, %c0_i32_0 : i32, i32, i32
  }
}

</mosaic_0001>

<llo_original>
// kernel: attention_forward.1
$region0: #{attention_forward.1}
  #allocation0 [shape = 'u32[]', space=smem, size = 0x4, offset = 0x4, fixed_abs, tag = 'smem constant byte address 0x4 - core index']
  #allocation1 [shape = 'u32[144,128]{1,0:T(1,128)}', space=vmem, size = 0x12000, scoped, tag = 'internal scratch']
  %s0 = inlined_call_operand.vmem [shape: f32[2,32,256], index: 0, kind: input, shape index: {}]
  %s1 = inlined_call_operand.vmem [shape: f32[2,32,64], index: 1, kind: input, shape index: {}]
  %s2 = inlined_call_operand.vmem [shape: f32[2,32,256], index: 2, kind: output, shape index: {}]
  %s3 = sld [smem:[#allocation0]]
  $region18: #{attention_forward.1} parent=0
    _
  %s5 = ssub.s32 1, %s3
  %s6 = scalar_select 0, %s5, %s3
  // Predicated region
  $region2: #{attention_forward.1} parent=0 // pred_check
    _
  $region3: #{attention_forward.1} parent=0 // pred_check_branch
    %8 = sbr.rel (0) target = $region5
  $region4: #{attention_forward.1} parent=0 // pred_region
    _
  $region5: #{attention_forward.1} parent=0 // pred_fallthru
    _
  // Predicated region
  $region6: #{attention_forward.1} parent=0 // pred_check
    _
  $region7: #{attention_forward.1} parent=0 // pred_check_branch
    %10 = sbr.rel (0) target = $region9
  $region8: #{attention_forward.1} parent=0 // pred_region
    _
  $region9: #{attention_forward.1} parent=0 // pred_fallthru
    _
  %v12 = vld [vmem:[%s1] sm:$0xff]
  %v13 = vld [vmem:[%s1 + $0x8] sm:$0xff]
  %v14 = vld [vmem:[%s1 + $0x10] sm:$0xff]
  %v15 = vld [vmem:[%s1 + $0x18] sm:$0xff]
  %v16 = vld [vmem:[%s1 + $0x20] sm:$0xff]
  %v17 = vld [vmem:[%s1 + $0x28] sm:$0xff]
  %v18 = vld [vmem:[%s1 + $0x30] sm:$0xff]
  %v19 = vld [vmem:[%s1 + $0x38] sm:$0xff]
  %v20 = vmul.f32 %v12, 0.17677669
  %v21 = vmul.f32 %v13, 0.17677669
  %v22 = vmul.f32 %v14, 0.17677669
  %v23 = vmul.f32 %v15, 0.17677669
  %v24 = vmul.f32 %v16, 0.17677669
  %v25 = vmul.f32 %v17, 0.17677669
  %v26 = vmul.f32 %v18, 0.17677669
  %v27 = vmul.f32 %v19, 0.17677669
  %v28 = vpack.c.bf16 %v21, %v20
  %v29 = vpack.c.bf16 %v23, %v22
  %v30 = vpack.c.bf16 %v25, %v24
  %v31 = vpack.c.bf16 %v27, %v26
  %v32 = vld [vmem:[%s0] sm:$0xff]
  %v33 = vld [vmem:[%s0 + $0x8] sm:$0xff]
  %v34 = vld [vmem:[%s0 + $0x10] sm:$0xff]
  %v35 = vld [vmem:[%s0 + $0x18] sm:$0xff]
  %v36 = vld [vmem:[%s0 + $0x20] sm:$0xff]
  %v37 = vld [vmem:[%s0 + $0x28] sm:$0xff]
  %v38 = vld [vmem:[%s0 + $0x30] sm:$0xff]
  %v39 = vld [vmem:[%s0 + $0x38] sm:$0xff]
  %v40 = vld [vmem:[%s0 + $0x40] sm:$0xff]
  %v41 = vld [vmem:[%s0 + $0x48] sm:$0xff]
  %v42 = vld [vmem:[%s0 + $0x50] sm:$0xff]
  %v43 = vld [vmem:[%s0 + $0x58] sm:$0xff]
  %v44 = vld [vmem:[%s0 + $0x60] sm:$0xff]
  %v45 = vld [vmem:[%s0 + $0x68] sm:$0xff]
  %v46 = vld [vmem:[%s0 + $0x70] sm:$0xff]
  %v47 = vld [vmem:[%s0 + $0x78] sm:$0xff]
  %v48 = vpack.c.bf16 %v34, %v32
  %v49 = vpack.c.bf16 %v35, %v33
  %v50 = vpack.c.bf16 %v38, %v36
  %v51 = vpack.c.bf16 %v39, %v37
  %v52 = vpack.c.bf16 %v42, %v40
  %v53 = vpack.c.bf16 %v43, %v41
  %v54 = vpack.c.bf16 %v46, %v44
  %v55 = vpack.c.bf16 %v47, %v45
  %56 = vxpose.xlu0.c.b16.start [1/8] %v28, 128
  %57 = vxpose.xlu0.c.b16.cont [2/8] %v29, 128
  %58 = vxpose.xlu0.c.b16.cont [3/8] 0, 128
  %59 = vxpose.xlu0.c.b16.cont [4/8] 0, 128
  %60 = vxpose.xlu0.c.b16.cont [5/8] 0, 128
  %61 = vxpose.xlu0.c.b16.cont [6/8] 0, 128
  %62 = vxpose.xlu0.c.b16.cont [7/8] 0, 128
  %63 = vxpose.xlu0.c.b16.end [8/8] 0, 128
  %v64 = vpop.trf.xlu0
  %v65 = vpop.trf.xlu0
  %v66 = vpop.trf.xlu0
  %v67 = vpop.trf.xlu0
  %v68 = vpop.trf.xlu0
  %v69 = vpop.trf.xlu0
  %v70 = vpop.trf.xlu0
  %v71 = vpop.trf.xlu0
  %vm72 = vcmask 261120
  %v74 = vsel %vm72, %v64, 0
  %v77 = vsel %vm72, %v65, 0
  %v80 = vsel %vm72, %v66, 0
  %v83 = vsel %vm72, %v67, 0
  %85 = vmatprep.subr.bf16.mxu0 0
  %86 = vmatpush1.bf16.msra.mxu0 0
  %87 = vmatprep.subr.bf16.mxu0 0
  %88 = vmatpush1.bf16.msra.mxu0 0
  %89 = vmatprep.subr.bf16.mxu0 0
  %90 = vmatpush1.bf16.msra.mxu0 0
  %91 = vmatprep.subr.bf16.mxu0 0
  %92 = vmatpush1.bf16.msra.mxu0 0
  %93 = vmatprep.subr.bf16.mxu0 0
  %94 = vmatpush1.bf16.msra.mxu0 0
  %95 = vmatprep.subr.bf16.mxu0 0
  %96 = vmatpush1.bf16.msra.mxu0 0
  %97 = vmatprep.subr.bf16.mxu0 %v51
  %98 = vmatpush1.bf16.msra.mxu0 %v50
  %99 = vmatprep.subr.bf16.mxu0 %v49
  %100 = vmatpush1.bf16.msra.mxu0 %v48
  %101 = vmatprep.subr.bf16.mxu0 0
  %102 = vmatpush2.bf16.msra.mxu0 0
  %103 = vmatprep.subr.bf16.mxu0 0
  %104 = vmatpush2.bf16.msra.mxu0 0
  %105 = vmatprep.subr.bf16.mxu0 0
  %106 = vmatpush2.bf16.msra.mxu0 0
  %107 = vmatprep.subr.bf16.mxu0 0
  %108 = vmatpush2.bf16.msra.mxu0 0
  %109 = vmatprep.subr.bf16.mxu0 0
  %110 = vmatpush2.bf16.msra.mxu0 0
  %111 = vmatprep.subr.bf16.mxu0 0
  %112 = vmatpush2.bf16.msra.mxu0 0
  %113 = vmatprep.subr.bf16.mxu0 0
  %114 = vmatpush2.bf16.msra.mxu0 0
  %115 = vmatprep.subr.bf16.mxu0 0
  %116 = vmatpush2.bf16.msra.mxu0 0
  %117 = vmatprep.mubr.bf16.mxu0 0
  %118 = vmatmul.mubr.bf16.gmra.mxu0 %v74
  %v119 = vpop.f32.mrf.mxu0
  %v120 = vadd.f32 0.0, %v119
  %v121 = vpop.f32.mrf.mxu0
  %v122 = vadd.f32 0.0, %v121
  %v123 = vpop.f32.mrf.mxu0
  %v124 = vadd.f32 0.0, %v123
  %v125 = vpop.f32.mrf.mxu0
  %v126 = vadd.f32 0.0, %v125
  %127 = vmatprep.mubr.bf16.mxu0 0
  %128 = vmatmul.mubr.bf16.gmra.mxu0 %v77
  %v129 = vpop.f32.mrf.mxu0
  %v130 = vadd.f32 0.0, %v129
  %v131 = vpop.f32.mrf.mxu0
  %v132 = vadd.f32 0.0, %v131
  %v133 = vpop.f32.mrf.mxu0
  %v134 = vadd.f32 0.0, %v133
  %v135 = vpop.f32.mrf.mxu0
  %v136 = vadd.f32 0.0, %v135
  %137 = vmatprep.mubr.bf16.mxu0 0
  %138 = vmatmul.mubr.bf16.gmra.mxu0 %v80
  %v139 = vpop.f32.mrf.mxu0
  %v140 = vadd.f32 0.0, %v139
  %v141 = vpop.f32.mrf.mxu0
  %v142 = vadd.f32 0.0, %v141
  %v143 = vpop.f32.mrf.mxu0
  %v144 = vadd.f32 0.0, %v143
  %v145 = vpop.f32.mrf.mxu0
  %v146 = vadd.f32 0.0, %v145
  %147 = vmatprep.mubr.bf16.mxu0 0
  %148 = vmatmul.mubr.bf16.gmra.mxu0 %v83
  %v149 = vpop.f32.mrf.mxu0
  %v150 = vadd.f32 0.0, %v149
  %v151 = vpop.f32.mrf.mxu0
  %v152 = vadd.f32 0.0, %v151
  %v153 = vpop.f32.mrf.mxu0
  %v154 = vadd.f32 0.0, %v153
  %v155 = vpop.f32.mrf.mxu0
  %v156 = vadd.f32 0.0, %v155
  %157 = vdwg.mxu0
  %158 = vxpose.xlu0.c.b16.start [1/8] %v30, 128
  %159 = vxpose.xlu0.c.b16.cont [2/8] %v31, 128
  %160 = vxpose.xlu0.c.b16.cont [3/8] 0, 128
  %161 = vxpose.xlu0.c.b16.cont [4/8] 0, 128
  %162 = vxpose.xlu0.c.b16.cont [5/8] 0, 128
  %163 = vxpose.xlu0.c.b16.cont [6/8] 0, 128
  %164 = vxpose.xlu0.c.b16.cont [7/8] 0, 128
  %165 = vxpose.xlu0.c.b16.end [8/8] 0, 128
  %v166 = vpop.trf.xlu0
  %v167 = vpop.trf.xlu0
  %v168 = vpop.trf.xlu0
  %v169 = vpop.trf.xlu0
  %v170 = vpop.trf.xlu0
  %v171 = vpop.trf.xlu0
  %v172 = vpop.trf.xlu0
  %v173 = vpop.trf.xlu0
  %v175 = vsel %vm72, %v166, 0
  %v178 = vsel %vm72, %v167, 0
  %v181 = vsel %vm72, %v168, 0
  %v184 = vsel %vm72, %v169, 0
  %186 = vmatprep.subr.bf16.mxu0 0
  %187 = vmatpush1.bf16.msra.mxu0 0
  %188 = vmatprep.subr.bf16.mxu0 0
  %189 = vmatpush1.bf16.msra.mxu0 0
  %190 = vmatprep.subr.bf16.mxu0 0
  %191 = vmatpush1.bf16.msra.mxu0 0
  %192 = vmatprep.subr.bf16.mxu0 0
  %193 = vmatpush1.bf16.msra.mxu0 0
  %194 = vmatprep.subr.bf16.mxu0 0
  %195 = vmatpush1.bf16.msra.mxu0 0
  %196 = vmatprep.subr.bf16.mxu0 0
  %197 = vmatpush1.bf16.msra.mxu0 0
  %198 = vmatprep.subr.bf16.mxu0 %v55
  %199 = vmatpush1.bf16.msra.mxu0 %v54
  %200 = vmatprep.subr.bf16.mxu0 %v53
  %201 = vmatpush1.bf16.msra.mxu0 %v52
  %202 = vmatprep.subr.bf16.mxu0 0
  %203 = vmatpush2.bf16.msra.mxu0 0
  %204 = vmatprep.subr.bf16.mxu0 0
  %205 = vmatpush2.bf16.msra.mxu0 0
  %206 = vmatprep.subr.bf16.mxu0 0
  %207 = vmatpush2.bf16.msra.mxu0 0
  %208 = vmatprep.subr.bf16.mxu0 0
  %209 = vmatpush2.bf16.msra.mxu0 0
  %210 = vmatprep.subr.bf16.mxu0 0
  %211 = vmatpush2.bf16.msra.mxu0 0
  %212 = vmatprep.subr.bf16.mxu0 0
  %213 = vmatpush2.bf16.msra.mxu0 0
  %214 = vmatprep.subr.bf16.mxu0 0
  %215 = vmatpush2.bf16.msra.mxu0 0
  %216 = vmatprep.subr.bf16.mxu0 0
  %217 = vmatpush2.bf16.msra.mxu0 0
  %218 = vmatprep.mubr.bf16.mxu0 0
  %219 = vmatmul.mubr.bf16.gmra.mxu0 %v175
  %v220 = vpop.f32.mrf.mxu0
  %v221 = vadd.f32 0.0, %v220
  %v222 = vpop.f32.mrf.mxu0
  %v223 = vadd.f32 0.0, %v222
  %v224 = vpop.f32.mrf.mxu0
  %v225 = vadd.f32 0.0, %v224
  %v226 = vpop.f32.mrf.mxu0
  %v227 = vadd.f32 0.0, %v226
  %228 = vmatprep.mubr.bf16.mxu0 0
  %229 = vmatmul.mubr.bf16.gmra.mxu0 %v178
  %v230 = vpop.f32.mrf.mxu0
  %v231 = vadd.f32 0.0, %v230
  %v232 = vpop.f32.mrf.mxu0
  %v233 = vadd.f32 0.0, %v232
  %v234 = vpop.f32.mrf.mxu0
  %v235 = vadd.f32 0.0, %v234
  %v236 = vpop.f32.mrf.mxu0
  %v237 = vadd.f32 0.0, %v236
  %238 = vmatprep.mubr.bf16.mxu0 0
  %239 = vmatmul.mubr.bf16.gmra.mxu0 %v181
  %v240 = vpop.f32.mrf.mxu0
  %v241 = vadd.f32 0.0, %v240
  %v242 = vpop.f32.mrf.mxu0
  %v243 = vadd.f32 0.0, %v242
  %v244 = vpop.f32.mrf.mxu0
  %v245 = vadd.f32 0.0, %v244
  %v246 = vpop.f32.mrf.mxu0
  %v247 = vadd.f32 0.0, %v246
  %248 = vmatprep.mubr.bf16.mxu0 0
  %249 = vmatmul.mubr.bf16.gmra.mxu0 %v184
  %v250 = vpop.f32.mrf.mxu0
  %v251 = vadd.f32 0.0, %v250
  %v252 = vpop.f32.mrf.mxu0
  %v253 = vadd.f32 0.0, %v252
  %v254 = vpop.f32.mrf.mxu0
  %v255 = vadd.f32 0.0, %v254
  %v256 = vpop.f32.mrf.mxu0
  %v257 = vadd.f32 0.0, %v256
  %258 = vdwg.mxu0
  %v259 = vmax.f32 %v120, %v124
  %v260 = vmax.f32 %v259, %v130
  %v261 = vmax.f32 %v260, %v134
  %v262 = vmax.f32 %v261, %v140
  %v263 = vmax.f32 %v262, %v144
  %v264 = vmax.f32 %v263, %v150
  %v265 = vmax.f32 %v264, %v154
  %v266 = vrot.slane %v265, 4
  %v267 = vmax.f32 %v265, %v266
  %v268 = vrot.slane %v267, 2
  %v269 = vmax.f32 %v267, %v268
  %v270 = vrot.slane %v269, 1
  %v271 = vmax.f32 %v269, %v270
  %v272 = vmax.f32 %v122, %v126
  %v273 = vmax.f32 %v272, %v132
  %v274 = vmax.f32 %v273, %v136
  %v275 = vmax.f32 %v274, %v142
  %v276 = vmax.f32 %v275, %v146
  %v277 = vmax.f32 %v276, %v152
  %v278 = vmax.f32 %v277, %v156
  %v279 = vrot.slane %v278, 4
  %v280 = vmax.f32 %v278, %v279
  %v281 = vrot.slane %v280, 2
  %v282 = vmax.f32 %v280, %v281
  %v283 = vrot.slane %v282, 1
  %v284 = vmax.f32 %v282, %v283
  %v285 = vmax.f32 %v221, %v225
  %v286 = vmax.f32 %v285, %v231
  %v287 = vmax.f32 %v286, %v235
  %v288 = vmax.f32 %v287, %v241
  %v289 = vmax.f32 %v288, %v245
  %v290 = vmax.f32 %v289, %v251
  %v291 = vmax.f32 %v290, %v255
  %v292 = vrot.slane %v291, 4
  %v293 = vmax.f32 %v291, %v292
  %v294 = vrot.slane %v293, 2
  %v295 = vmax.f32 %v293, %v294
  %v296 = vrot.slane %v295, 1
  %v297 = vmax.f32 %v295, %v296
  %v298 = vmax.f32 %v223, %v227
  %v299 = vmax.f32 %v298, %v233
  %v300 = vmax.f32 %v299, %v237
  %v301 = vmax.f32 %v300, %v243
  %v302 = vmax.f32 %v301, %v247
  %v303 = vmax.f32 %v302, %v253
  %v304 = vmax.f32 %v303, %v257
  %v305 = vrot.slane %v304, 4
  %v306 = vmax.f32 %v304, %v305
  %v307 = vrot.slane %v306, 2
  %v308 = vmax.f32 %v306, %v307
  %v309 = vrot.slane %v308, 1
  %v310 = vmax.f32 %v308, %v309
  %v311 = vsub.f32 %v120, %v271
  %v312 = vsub.f32 %v122, %v284
  %v313 = vsub.f32 %v124, %v271
  %v314 = vsub.f32 %v126, %v284
  %v315 = vsub.f32 %v130, %v271
  %v316 = vsub.f32 %v132, %v284
  %v317 = vsub.f32 %v134, %v271
  %v318 = vsub.f32 %v136, %v284
  %v319 = vsub.f32 %v140, %v271
  %v320 = vsub.f32 %v142, %v284
  %v321 = vsub.f32 %v144, %v271
  %v322 = vsub.f32 %v146, %v284
  %v323 = vsub.f32 %v150, %v271
  %v324 = vsub.f32 %v152, %v284
  %v325 = vsub.f32 %v154, %v271
  %v326 = vsub.f32 %v156, %v284
  %v327 = vsub.f32 %v221, %v297
  %v328 = vsub.f32 %v223, %v310
  %v329 = vsub.f32 %v225, %v297
  %v330 = vsub.f32 %v227, %v310
  %v331 = vsub.f32 %v231, %v297
  %v332 = vsub.f32 %v233, %v310
  %v333 = vsub.f32 %v235, %v297
  %v334 = vsub.f32 %v237, %v310
  %v335 = vsub.f32 %v241, %v297
  %v336 = vsub.f32 %v243, %v310
  %v337 = vsub.f32 %v245, %v297
  %v338 = vsub.f32 %v247, %v310
  %v339 = vsub.f32 %v251, %v297
  %v340 = vsub.f32 %v253, %v310
  %v341 = vsub.f32 %v255, %v297
  %v342 = vsub.f32 %v257, %v310
  %v343 = vmul.f32 %v311, 1.442695
  %v344 = vpow.pop %v343
  %v345 = vmul.f32 %v312, 1.442695
  %v346 = vpow.pop %v345
  %v347 = vmul.f32 %v313, 1.442695
  %v348 = vpow.pop %v347
  %v349 = vmul.f32 %v314, 1.442695
  %v350 = vpow.pop %v349
  %v351 = vmul.f32 %v315, 1.442695
  %v352 = vpow.pop %v351
  %v353 = vmul.f32 %v316, 1.442695
  %v354 = vpow.pop %v353
  %v355 = vmul.f32 %v317, 1.442695
  %v356 = vpow.pop %v355
  %v357 = vmul.f32 %v318, 1.442695
  %v358 = vpow.pop %v357
  %v359 = vmul.f32 %v319, 1.442695
  %v360 = vpow.pop %v359
  %v361 = vmul.f32 %v320, 1.442695
  %v362 = vpow.pop %v361
  %v363 = vmul.f32 %v321, 1.442695
  %v364 = vpow.pop %v363
  %v365 = vmul.f32 %v322, 1.442695
  %v366 = vpow.pop %v365
  %v367 = vmul.f32 %v323, 1.442695
  %v368 = vpow.pop %v367
  %v369 = vmul.f32 %v324, 1.442695
  %v370 = vpow.pop %v369
  %v371 = vmul.f32 %v325, 1.442695
  %v372 = vpow.pop %v371
  %v373 = vmul.f32 %v326, 1.442695
  %v374 = vpow.pop %v373
  %v375 = vmul.f32 %v327, 1.442695
  %v376 = vpow.pop %v375
  %v377 = vmul.f32 %v328, 1.442695
  %v378 = vpow.pop %v377
  %v379 = vmul.f32 %v329, 1.442695
  %v380 = vpow.pop %v379
  %v381 = vmul.f32 %v330, 1.442695
  %v382 = vpow.pop %v381
  %v383 = vmul.f32 %v331, 1.442695
  %v384 = vpow.pop %v383
  %v385 = vmul.f32 %v332, 1.442695
  %v386 = vpow.pop %v385
  %v387 = vmul.f32 %v333, 1.442695
  %v388 = vpow.pop %v387
  %v389 = vmul.f32 %v334, 1.442695
  %v390 = vpow.pop %v389
  %v391 = vmul.f32 %v335, 1.442695
  %v392 = vpow.pop %v391
  %v393 = vmul.f32 %v336, 1.442695
  %v394 = vpow.pop %v393
  %v395 = vmul.f32 %v337, 1.442695
  %v396 = vpow.pop %v395
  %v397 = vmul.f32 %v338, 1.442695
  %v398 = vpow.pop %v397
  %v399 = vmul.f32 %v339, 1.442695
  %v400 = vpow.pop %v399
  %v401 = vmul.f32 %v340, 1.442695
  %v402 = vpow.pop %v401
  %v403 = vmul.f32 %v341, 1.442695
  %v404 = vpow.pop %v403
  %v405 = vmul.f32 %v342, 1.442695
  %v406 = vpow.pop %v405
  %v407 = vadd.f32 %v344, %v348
  %v408 = vadd.f32 %v407, %v352
  %v409 = vadd.f32 %v408, %v356
  %v410 = vadd.f32 %v409, %v360
  %v411 = vadd.f32 %v410, %v364
  %v412 = vadd.f32 %v411, %v368
  %v413 = vadd.f32 %v412, %v372
  %v414 = vrot.slane %v413, 4
  %v415 = vadd.f32 %v413, %v414
  %v416 = vrot.slane %v415, 2
  %v417 = vadd.f32 %v415, %v416
  %v418 = vrot.slane %v417, 1
  %v419 = vadd.f32 %v417, %v418
  %v420 = vadd.f32 %v346, %v350
  %v421 = vadd.f32 %v420, %v354
  %v422 = vadd.f32 %v421, %v358
  %v423 = vadd.f32 %v422, %v362
  %v424 = vadd.f32 %v423, %v366
  %v425 = vadd.f32 %v424, %v370
  %v426 = vadd.f32 %v425, %v374
  %v427 = vrot.slane %v426, 4
  %v428 = vadd.f32 %v426, %v427
  %v429 = vrot.slane %v428, 2
  %v430 = vadd.f32 %v428, %v429
  %v431 = vrot.slane %v430, 1
  %v432 = vadd.f32 %v430, %v431
  %v433 = vadd.f32 %v376, %v380
  %v434 = vadd.f32 %v433, %v384
  %v435 = vadd.f32 %v434, %v388
  %v436 = vadd.f32 %v435, %v392
  %v437 = vadd.f32 %v436, %v396
  %v438 = vadd.f32 %v437, %v400
  %v439 = vadd.f32 %v438, %v404
  %v440 = vrot.slane %v439, 4
  %v441 = vadd.f32 %v439, %v440
  %v442 = vrot.slane %v441, 2
  %v443 = vadd.f32 %v441, %v442
  %v444 = vrot.slane %v443, 1
  %v445 = vadd.f32 %v443, %v444
  %v446 = vadd.f32 %v378, %v382
  %v447 = vadd.f32 %v446, %v386
  %v448 = vadd.f32 %v447, %v390
  %v449 = vadd.f32 %v448, %v394
  %v450 = vadd.f32 %v449, %v398
  %v451 = vadd.f32 %v450, %v402
  %v452 = vadd.f32 %v451, %v406
  %v453 = vrot.slane %v452, 4
  %v454 = vadd.f32 %v452, %v453
  %v455 = vrot.slane %v454, 2
  %v456 = vadd.f32 %v454, %v455
  %v457 = vrot.slane %v456, 1
  %v458 = vadd.f32 %v456, %v457
  %v459 = vpack.c.bf16 %v348, %v344
  %v460 = vpack.c.bf16 %v350, %v346
  %v461 = vpack.c.bf16 %v356, %v352
  %v462 = vpack.c.bf16 %v358, %v354
  %v463 = vpack.c.bf16 %v364, %v360
  %v464 = vpack.c.bf16 %v366, %v362
  %v465 = vpack.c.bf16 %v372, %v368
  %v466 = vpack.c.bf16 %v374, %v370
  %v467 = vpack.c.bf16 %v380, %v376
  %v468 = vpack.c.bf16 %v382, %v378
  %v469 = vpack.c.bf16 %v388, %v384
  %v470 = vpack.c.bf16 %v390, %v386
  %v471 = vpack.c.bf16 %v396, %v392
  %v472 = vpack.c.bf16 %v398, %v394
  %v473 = vpack.c.bf16 %v404, %v400
  %v474 = vpack.c.bf16 %v406, %v402
  %vm475 = vcmask 523264
  %v477 = vsel %vm475, %v28, 0
  %v480 = vsel %vm475, %v29, 0
  %482 = vmatprep.subr.bf16.mxu0 0
  %483 = vmatpush1.bf16.msra.mxu0 0
  %484 = vmatprep.subr.bf16.mxu0 0
  %485 = vmatpush1.bf16.msra.mxu0 0
  %486 = vmatprep.subr.bf16.mxu0 0
  %487 = vmatpush1.bf16.msra.mxu0 0
  %488 = vmatprep.subr.bf16.mxu0 0
  %489 = vmatpush1.bf16.msra.mxu0 0
  %490 = vmatprep.subr.bf16.mxu0 %v466
  %491 = vmatpush1.bf16.msra.mxu0 %v465
  %492 = vmatprep.subr.bf16.mxu0 %v464
  %493 = vmatpush1.bf16.msra.mxu0 %v463
  %494 = vmatprep.subr.bf16.mxu0 %v462
  %495 = vmatpush1.bf16.msra.mxu0 %v461
  %496 = vmatprep.subr.bf16.mxu0 %v460
  %497 = vmatpush1.bf16.msra.mxu0 %v459
  %498 = vmatprep.subr.bf16.mxu0 0
  %499 = vmatpush2.bf16.msra.mxu0 0
  %500 = vmatprep.subr.bf16.mxu0 0
  %501 = vmatpush2.bf16.msra.mxu0 0
  %502 = vmatprep.subr.bf16.mxu0 0
  %503 = vmatpush2.bf16.msra.mxu0 0
  %504 = vmatprep.subr.bf16.mxu0 0
  %505 = vmatpush2.bf16.msra.mxu0 0
  %506 = vmatprep.subr.bf16.mxu0 0
  %507 = vmatpush2.bf16.msra.mxu0 0
  %508 = vmatprep.subr.bf16.mxu0 0
  %509 = vmatpush2.bf16.msra.mxu0 0
  %510 = vmatprep.subr.bf16.mxu0 0
  %511 = vmatpush2.bf16.msra.mxu0 0
  %512 = vmatprep.subr.bf16.mxu0 0
  %513 = vmatpush2.bf16.msra.mxu0 0
  %514 = vmatprep.mubr.bf16.mxu0 0
  %515 = vmatmul.mubr.bf16.gmra.mxu0 %v477
  %v516 = vpop.f32.mrf.mxu0
  %v517 = vadd.f32 0.0, %v516
  %v518 = vpop.f32.mrf.mxu0
  %v519 = vadd.f32 0.0, %v518
  %v520 = vpop.f32.mrf.mxu0
  %v521 = vadd.f32 0.0, %v520
  %v522 = vpop.f32.mrf.mxu0
  %v523 = vadd.f32 0.0, %v522
  %524 = vmatprep.mubr.bf16.mxu0 0
  %525 = vmatmul.mubr.bf16.gmra.mxu0 %v480
  %v526 = vpop.f32.mrf.mxu0
  %v527 = vadd.f32 0.0, %v526
  %v528 = vpop.f32.mrf.mxu0
  %v529 = vadd.f32 0.0, %v528
  %v530 = vpop.f32.mrf.mxu0
  %v531 = vadd.f32 0.0, %v530
  %v532 = vpop.f32.mrf.mxu0
  %v533 = vadd.f32 0.0, %v532
  %534 = vdwg.mxu0
  %v536 = vsel %vm475, %v30, 0
  %v539 = vsel %vm475, %v31, 0
  %541 = vmatprep.subr.bf16.mxu0 0
  %542 = vmatpush1.bf16.msra.mxu0 0
  %543 = vmatprep.subr.bf16.mxu0 0
  %544 = vmatpush1.bf16.msra.mxu0 0
  %545 = vmatprep.subr.bf16.mxu0 0
  %546 = vmatpush1.bf16.msra.mxu0 0
  %547 = vmatprep.subr.bf16.mxu0 0
  %548 = vmatpush1.bf16.msra.mxu0 0
  %549 = vmatprep.subr.bf16.mxu0 %v474
  %550 = vmatpush1.bf16.msra.mxu0 %v473
  %551 = vmatprep.subr.bf16.mxu0 %v472
  %552 = vmatpush1.bf16.msra.mxu0 %v471
  %553 = vmatprep.subr.bf16.mxu0 %v470
  %554 = vmatpush1.bf16.msra.mxu0 %v469
  %555 = vmatprep.subr.bf16.mxu0 %v468
  %556 = vmatpush1.bf16.msra.mxu0 %v467
  %557 = vmatprep.subr.bf16.mxu0 0
  %558 = vmatpush2.bf16.msra.mxu0 0
  %559 = vmatprep.subr.bf16.mxu0 0
  %560 = vmatpush2.bf16.msra.mxu0 0
  %561 = vmatprep.subr.bf16.mxu0 0
  %562 = vmatpush2.bf16.msra.mxu0 0
  %563 = vmatprep.subr.bf16.mxu0 0
  %564 = vmatpush2.bf16.msra.mxu0 0
  %565 = vmatprep.subr.bf16.mxu0 0
  %566 = vmatpush2.bf16.msra.mxu0 0
  %567 = vmatprep.subr.bf16.mxu0 0
  %568 = vmatpush2.bf16.msra.mxu0 0
  %569 = vmatprep.subr.bf16.mxu0 0
  %570 = vmatpush2.bf16.msra.mxu0 0
  %571 = vmatprep.subr.bf16.mxu0 0
  %572 = vmatpush2.bf16.msra.mxu0 0
  %573 = vmatprep.mubr.bf16.mxu0 0
  %574 = vmatmul.mubr.bf16.gmra.mxu0 %v536
  %v575 = vpop.f32.mrf.mxu0
  %v576 = vadd.f32 0.0, %v575
  %v577 = vpop.f32.mrf.mxu0
  %v578 = vadd.f32 0.0, %v577
  %v579 = vpop.f32.mrf.mxu0
  %v580 = vadd.f32 0.0, %v579
  %v581 = vpop.f32.mrf.mxu0
  %v582 = vadd.f32 0.0, %v581
  %583 = vmatprep.mubr.bf16.mxu0 0
  %584 = vmatmul.mubr.bf16.gmra.mxu0 %v539
  %v585 = vpop.f32.mrf.mxu0
  %v586 = vadd.f32 0.0, %v585
  %v587 = vpop.f32.mrf.mxu0
  %v588 = vadd.f32 0.0, %v587
  %v589 = vpop.f32.mrf.mxu0
  %v590 = vadd.f32 0.0, %v589
  %v591 = vpop.f32.mrf.mxu0
  %v592 = vadd.f32 0.0, %v591
  %593 = vdwg.mxu0
  %v594 = vmul.f32 %v419, 0.17677669
  %v595 = vmul.f32 %v432, 0.17677669
  %v596 = vmul.f32 %v445, 0.17677669
  %v597 = vmul.f32 %v458, 0.17677669
  %v598 = vrcp.pop %v594
  %v599 = vrcp.pop %v595
  %v600 = vrcp.pop %v596
  %v601 = vrcp.pop %v597
  %v602 = vmul.f32 %v517, %v598
  %v603 = vmul.f32 %v519, %v599
  %v604 = vmul.f32 %v521, %v598
  %v605 = vmul.f32 %v523, %v599
  %v606 = vmul.f32 %v527, %v598
  %v607 = vmul.f32 %v529, %v599
  %v608 = vmul.f32 %v531, %v598
  %v609 = vmul.f32 %v533, %v599
  %v610 = vmul.f32 %v576, %v600
  %v611 = vmul.f32 %v578, %v601
  %v612 = vmul.f32 %v580, %v600
  %v613 = vmul.f32 %v582, %v601
  %v614 = vmul.f32 %v586, %v600
  %v615 = vmul.f32 %v588, %v601
  %v616 = vmul.f32 %v590, %v600
  %v617 = vmul.f32 %v592, %v601
  %618 = vst [vmem:[%s2] sm:$0xff] %v602
  %619 = vst [vmem:[%s2 + $0x8] sm:$0xff] %v603
  %620 = vst [vmem:[%s2 + $0x10] sm:$0xff] %v604
  %621 = vst [vmem:[%s2 + $0x18] sm:$0xff] %v605
  %622 = vst [vmem:[%s2 + $0x20] sm:$0xff] %v606
  %623 = vst [vmem:[%s2 + $0x28] sm:$0xff] %v607
  %624 = vst [vmem:[%s2 + $0x30] sm:$0xff] %v608
  %625 = vst [vmem:[%s2 + $0x38] sm:$0xff] %v609
  %626 = vst [vmem:[%s2 + $0x40] sm:$0xff] %v610
  %627 = vst [vmem:[%s2 + $0x48] sm:$0xff] %v611
  %628 = vst [vmem:[%s2 + $0x50] sm:$0xff] %v612
  %629 = vst [vmem:[%s2 + $0x58] sm:$0xff] %v613
  %630 = vst [vmem:[%s2 + $0x60] sm:$0xff] %v614
  %631 = vst [vmem:[%s2 + $0x68] sm:$0xff] %v615
  %632 = vst [vmem:[%s2 + $0x70] sm:$0xff] %v616
  %633 = vst [vmem:[%s2 + $0x78] sm:$0xff] %v617
  // Predicated region
  $region10: #{attention_forward.1} parent=0 // pred_check
    _
  $region11: #{attention_forward.1} parent=0 // pred_check_branch
    %635 = sbr.rel (0) target = $region13
  $region12: #{attention_forward.1} parent=0 // pred_region
    _
  $region13: #{attention_forward.1} parent=0 // pred_fallthru
    _
  // Predicated region
  $region14: #{attention_forward.1} parent=0 // pred_check
    _
  $region15: #{attention_forward.1} parent=0 // pred_check_branch
    %637 = sbr.rel (0) target = $region17
  $region16: #{attention_forward.1} parent=0 // pred_region
    _
  $region17: #{attention_forward.1} parent=0 // pred_fallthru
    _

</llo_original>
